<compile_context>
chip_gen: v7x
topology: tpu7x:2x2x1
jax: 0.10.0
libtpu: 0.0.40
codegen_flags: <defaults>
</compile_context>

<pallas_src>
import functools

import numpy as np
import jax
import jax.numpy as jnp
from jax.experimental import pallas as pl
from jax.experimental.pallas import tpu as pltpu


# ------------------------------ Pallas kernel -------------------------------


def _fused_tcdecoder_kernel(x_ref, w_ref, b_ref, o_ref, *, plan):
    """Whole batch tile through the whole decoder in one kernel invocation.

    Every stage is a (TB, Fin) @ (Fin, Fout) MXU matmul (bf16 operands, f32
    accumulation) plus an f32 VPU bias/ReLU epilogue; causality, dilation,
    upsampling and the entry Linear are baked into the prepped weight slab.
    `plan` entries (static python ints):
      (w1_r0, w1_rows, w1_cols, b1_row, split, w2_r0, w2_rows, w2_cols, b2_row)
    When `split` is not None the first matmul computes [conv1 | residual]
    with a single MXU weight push and is split by a lane-aligned slice.
    """
    a = x_ref[...]                                           # (TB, Fin) f32
    for (w1_r0, w1_rows, w1_cols, b1_row, split,
         w2_r0, w2_rows, w2_cols, b2_row) in plan:
        w1 = w_ref[w1_r0:w1_r0 + w1_rows, :w1_cols]          # bf16 slab slice
        b1 = b_ref[b1_row:b1_row + 1, :w1_cols]              # f32
        z = jnp.dot(a.astype(jnp.bfloat16), w1,
                    preferred_element_type=jnp.float32) + b1
        if split is None:          # no downsample: residual = block input
            h = jnp.maximum(z, 0.0)
            res = a
        else:                      # z = [conv1 | residual], lane-aligned split
            h = jnp.maximum(z[:, :split], 0.0)
            res = z[:, split:]
        w2 = w_ref[w2_r0:w2_r0 + w2_rows, :w2_cols]
        b2 = b_ref[b2_row:b2_row + 1, :w2_cols]
        h = jnp.maximum(jnp.dot(h.astype(jnp.bfloat16), w2,
                                preferred_element_type=jnp.float32) + b2, 0.0)
        a = jnp.maximum(h + res, 0.0)        # residual add + ReLU epilogue
    o_ref[...] = a


def tc_decoder_forward(prepped, x):
    """x: (B, input_dim) -> (B, out_dim, seq_len)."""
    B, in_dim = x.shape
    T, out_dim = prepped["seq_len"], prepped["out_dim"]
    f_out, f_out_pad = out_dim * T, prepped["f_out_pad"]
    w_slab, b_slab, plan = prepped["w_slab"], prepped["b_slab"], prepped["plan"]

    # Batch-block the grid: all rows in one step for small B (one launch, no
    # per-row overhead, lane-dense (B, F) activations); 256-row tiles marked
    # 'parallel' for large B so v7x can shard them across its 2 TensorCores.
    TB = B if B <= 256 else 256
    nb = pl.cdiv(B, TB)
    B_pad = nb * TB
    xp = jnp.pad(x, ((0, B_pad - B), (0, 0))) if B_pad != B else x

    weight_bytes = prepped["weight_bytes"]
    vmem_limit = (None if weight_bytes <= 8 * 1024 * 1024 else
                  min(128 * 1024 * 1024, 4 * weight_bytes + (16 << 20)))

    out = pl.pallas_call(
        functools.partial(_fused_tcdecoder_kernel, plan=plan),
        out_shape=jax.ShapeDtypeStruct((B_pad, f_out_pad), jnp.float32),
        grid=(nb,),
        in_specs=[
            pl.BlockSpec((TB, in_dim), lambda b: (b, 0)),
            pl.BlockSpec(w_slab.shape, lambda b: (0, 0)),   # one weight slab
            pl.BlockSpec(b_slab.shape, lambda b: (0, 0)),   # one bias slab
        ],
        out_specs=pl.BlockSpec((TB, f_out_pad), lambda b: (b, 0)),
        compiler_params=pltpu.CompilerParams(
            dimension_semantics=("parallel",) if nb > 1 else ("arbitrary",),
            vmem_limit_bytes=vmem_limit),
        cost_estimate=pl.CostEstimate(
            flops=int(B_pad) * int(prepped["flops_per_row"]),
            transcendentals=0,
            bytes_accessed=int(weight_bytes + B_pad * (in_dim + f_out_pad) * 4)),
    )(xp, w_slab, b_slab)

    return out[:B, :f_out].reshape(B, out_dim, T)


# --------------------------- Parameter preparation --------------------------


def _round_up(v, m):
    return ((v + m - 1) // m) * m


def _pad2(a, rows, cols):
    a = np.asarray(a, np.float32)
    out = np.zeros((rows, cols), np.float32)
    out[:a.shape[0], :a.shape[1]] = a
    return out


def _unroll_causal_conv(w, bias, T, dilation):
    """Time-unroll causal dilated Conv1d (pad=(K-1)*d + Chomp1d) into a matrix.

    Returns (M, b) with M (Cin*T, Cout*T), b (1, Cout*T) such that for a
    row-flattened activation x[c*T + t]:
        (x @ M + b)[o*T + t] == conv output at (channel o, time t).
    """
    w = np.asarray(w, np.float32)
    c_out, c_in, K = w.shape
    M = np.zeros((c_out * T, c_in * T), np.float32)
    rows = np.arange(c_out)[:, None] * T
    cols = np.arange(c_in)[None, :] * T
    for k in range(K):
        s = (K - 1 - k) * dilation
        for t in range(s, T):
            M[rows + t, cols + (t - s)] += w[:, :, k]
    b = np.repeat(np.asarray(bias, np.float32), T).reshape(1, c_out * T)
    return M.T, b


def prepare_params(params, *, input_dim, out_dim, h_dims, seq_len,
                   kernel_size, dilation_base, sampling_factor):
    """One-time host-side prep.

    Folds nn.Upsample(nearest) into decode_entry, time-unrolls every causal
    dilated conv, fuses the entry Linear into block-0's conv1/residual, fuses
    each conv1 with its downsample into one column-concatenated matmul,
    zero-pads every output width to a multiple of 128 lanes, and packs all
    matrices (bf16) / biases (f32) into two tile-aligned slabs.
    """
    T = seq_len
    L = T // sampling_factor
    h0 = h_dims[0]

    # decode_entry + Upsample(nearest, x sampling_factor) -> E: (In, h0*T).
    W = np.asarray(params["entry_w"], np.float32).reshape(h0, L, input_dim)
    E = np.repeat(W, sampling_factor, axis=1).reshape(h0 * T, input_dim).T
    eb = np.repeat(np.asarray(params["entry_b"], np.float32).reshape(h0, L),
                   sampling_factor, axis=1).reshape(1, h0 * T)

    layer_dims = [h0] + list(h_dims[1:]) + [out_dim]

    mats, biases, blocks_meta = [], [], []
    for i, blk in enumerate(params["blocks"]):
        d = dilation_base ** i
        cin, cout = layer_dims[i], layer_dims[i + 1]
        fout_pad = _round_up(cout * T, 128)
        m1, b1 = _unroll_causal_conv(blk["w1"], blk["b1"], T, d)
        m2, b2 = _unroll_causal_conv(blk["w2"], blk["b2"], T, d)
        has_down = blk["wd"] is not None
        if has_down:
            md, bd = _unroll_causal_conv(blk["wd"], blk["bd"], T, 1)

        if i == 0:
            # Fold entry(+upsample) into conv1 AND the residual path: the first
            # matmul contracts over input_dim instead of h0*T.
            fin_rows = input_dim
            M1, B1 = E @ m1, eb @ m1 + b1
            Mr, Br = (E @ md, eb @ md + bd) if has_down else (E, eb)
            split = fout_pad
        else:
            fin_rows = _round_up(cin * T, 128)   # == previous block's padded width
            M1, B1 = m1, b1
            if has_down:
                Mr, Br, split = md, bd, fout_pad
            else:
                Mr = Br = None
                split = None

        W1 = _pad2(M1, fin_rows, fout_pad)
        B1 = _pad2(B1, 1, fout_pad)
        if split is not None:                    # fuse conv1 + residual matmul
            W1 = np.concatenate([W1, _pad2(Mr, fin_rows, fout_pad)], axis=1)
            B1 = np.concatenate([B1, _pad2(Br, 1, fout_pad)], axis=1)
        W2 = _pad2(m2, fout_pad, fout_pad)
        B2 = _pad2(b2, 1, fout_pad)

        blocks_meta.append((len(mats), len(biases), split,
                            len(mats) + 1, len(biases) + 1))
        mats += [W1, W2]
        biases += [B1, B2]

    # One bf16 weight slab (row-stacked, 32-row-aligned offsets) + one f32
    # bias slab -> 2 DMA descriptors instead of 13 tile-padded refs.
    slab_cols = _round_up(max(m.shape[1] for m in mats), 128)
    offs, row = [], 0
    for m in mats:
        offs.append(row)
        row += _round_up(m.shape[0], 32)
    w_slab = np.zeros((row, slab_cols), np.float32)
    for m, r0 in zip(mats, offs):
        w_slab[r0:r0 + m.shape[0], :m.shape[1]] = m
    b_slab = np.zeros((_round_up(len(biases), 8), slab_cols), np.float32)
    for r, b in enumerate(biases):
        b_slab[r, :b.shape[1]] = b[0]

    plan = tuple(
        (offs[iw1], mats[iw1].shape[0], mats[iw1].shape[1], ib1, split,
         offs[iw2], mats[iw2].shape[0], mats[iw2].shape[1], ib2)
        for (iw1, ib1, split, iw2, ib2) in blocks_meta)

    weight_bytes = int(w_slab.size * 2 + b_slab.size * 4)
    if weight_bytes > 24 * 1024 * 1024:
        # TODO(synk): for large C*T the O((C*T)^2) unrolled weights exceed the
        # v7x VMEM budget; fall back to a K-tap conv loop or tile the unrolled
        # matmul over the contraction axis with an 'arbitrary' reduction grid
        # axis and a VMEM f32 accumulator.
        raise NotImplementedError(
            f"unrolled weight slab ({weight_bytes / 2**20:.1f} MiB) exceeds "
            "the VMEM budget; tiled fallback not implemented")

    return {
        "w_slab": jnp.asarray(w_slab, jnp.bfloat16),
        "b_slab": jnp.asarray(b_slab, jnp.float32),
        "plan": plan,
        "out_dim": out_dim,
        "seq_len": T,
        "f_out_pad": _round_up(out_dim * T, 128),
        "flops_per_row": 2 * sum(m.shape[0] * m.shape[1] for m in mats),
        "weight_bytes": weight_bytes,
    }


def init_params(key, input_dim, out_dim, h_dims, seq_len, kernel_size,
                sampling_factor):
    """Synthetic deterministic parameters in PyTorch layouts."""
    L = seq_len // sampling_factor
    layer_dims = [h_dims[0]] + list(h_dims[1:]) + [out_dim]
    keys = iter(jax.random.split(key, 2 + 6 * (len(layer_dims) - 1)))

    def rnd(shape):
        return 0.1 * jax.random.normal(next(keys), shape, jnp.float32)

    params = {
        "entry_w": rnd((h_dims[0] * L, input_dim)),   # nn.Linear (Out, In)
        "entry_b": rnd((h_dims[0] * L,)),
        "blocks": [],
    }
    for i in range(len(layer_dims) - 1):
        cin, cout = layer_dims[i], layer_dims[i + 1]
        params["blocks"].append({
            "w1": rnd((cout, cin, kernel_size)), "b1": rnd((cout,)),
            "w2": rnd((cout, cout, kernel_size)), "b2": rnd((cout,)),
            "wd": rnd((cout, cin, 1)) if cin != cout else None,
            "bd": rnd((cout,)) if cin != cout else None,
        })
    return params


# ------------------------- Pure-JAX reference check -------------------------


def _ref_forward(params, x, *, h_dims, seq_len, dilation_base,
                 sampling_factor):
    hi = jax.lax.Precision.HIGHEST
    L = seq_len // sampling_factor
    B = x.shape[0]
    y = jnp.dot(x, params["entry_w"].T, precision=hi) + params["entry_b"]
    y = y.reshape(B, h_dims[0], L)
    y = jnp.repeat(y, sampling_factor, axis=-1)        # nn.Upsample (nearest)

    def conv(z, w, b, d, relu):
        K = w.shape[-1]
        pad = (K - 1) * d
        zp = jnp.pad(z, ((0, 0), (0, 0), (pad, 0)))
        acc = sum(jnp.einsum("oc,bct->bot", w[:, :, k],
                             zp[:, :, k * d:k * d + seq_len], precision=hi)
                  for k in range(K)) + b[None, :, None]
        return jnp.maximum(acc, 0.0) if relu else acc

    for i, blk in enumerate(params["blocks"]):
        d = dilation_base ** i
        h = conv(y, blk["w1"], blk["b1"], d, True)
        h = conv(h, blk["w2"], blk["b2"], d, True)
        res = (conv(y, blk["wd"], blk["bd"], 1, False)
               if blk["wd"] is not None else y)
        y = jnp.maximum(h + res, 0.0)
    return y


# ----------------------------------- Main ------------------------------------


if __name__ == "__main__":
    input_dim = 32          # latent dim fed to decode_entry
    out_dim = 4             # output features per timestep
    h_dims = [16, 16]       # decoder hidden channel sizes
    seq_len = 16
    kernel_size = 3
    dilation_base = 2
    sampling_factor = 4
    batch = 2

    key = jax.random.PRNGKey(0)
    k_params, k_x = jax.random.split(key)
    params = init_params(k_params, input_dim, out_dim, h_dims, seq_len,
                         kernel_size, sampling_factor)
    x = jax.random.normal(k_x, (batch, input_dim), jnp.float32)

    prepped = prepare_params(
        params, input_dim=input_dim, out_dim=out_dim, h_dims=h_dims,
        seq_len=seq_len, kernel_size=kernel_size,
        dilation_base=dilation_base, sampling_factor=sampling_factor)

    out = tc_decoder_forward(prepped, x)
    jax.block_until_ready(out)
    assert out.shape == (batch, out_dim, seq_len), out.shape
    assert out.dtype == jnp.float32

    ref = _ref_forward(params, x, h_dims=h_dims, seq_len=seq_len,
                       dilation_base=dilation_base,
                       sampling_factor=sampling_factor)
    # Tolerance: bf16 MXU operands (f32 accumulation) vs f32 HIGHEST reference.
    assert jnp.allclose(out, ref, rtol=3e-2, atol=3e-2), (
        "max abs diff", float(jnp.max(jnp.abs(out - ref))))
    print("KERNEL_OK")
</pallas_src>

<mosaic_0001>
module attributes {stable_mosaic.version = 11 : i64} {
  func.func @_fused_tcdecoder_kernel(%arg0: i32, %arg1: memref<2x32xf32, #tpu.memory_space<vmem>>, %arg2: memref<672x512xbf16, #tpu.memory_space<vmem>>, %arg3: memref<8x512xf32, #tpu.memory_space<vmem>>, %arg4: memref<2x128xf32, #tpu.memory_space<vmem>>) attributes {dimension_semantics = [#tpu.dimension_semantics<arbitrary>], iteration_bounds = array<i64: 1>, scalar_prefetch = 0 : i64, scratch_operands = 0 : i64, tpu.core_type = #tpu.core_type<tc>, window_params = [{transform_indices = @transform_0, window_bounds = array<i64: 2, 32>}, {pipeline_mode = #tpu.pipeline_mode<synchronous>, transform_indices = @transform_1, window_bounds = array<i64: 672, 512>}, {pipeline_mode = #tpu.pipeline_mode<synchronous>, transform_indices = @transform_2, window_bounds = array<i64: 8, 512>}, {transform_indices = @transform_3, window_bounds = array<i64: 2, 128>}]} {
    %c0 = arith.constant 0 : index
    %c0_0 = arith.constant 0 : index
    %0 = vector.load %arg1[%c0, %c0_0] : memref<2x32xf32, #tpu.memory_space<vmem>>, vector<2x32xf32>
    %c0_1 = arith.constant 0 : index
    %c0_2 = arith.constant 0 : index
    %1 = vector.load %arg2[%c0_1, %c0_2] : memref<672x512xbf16, #tpu.memory_space<vmem>>, vector<32x512xbf16>
    %c0_3 = arith.constant 0 : index
    %c0_4 = arith.constant 0 : index
    %2 = vector.load %arg3[%c0_3, %c0_4] : memref<8x512xf32, #tpu.memory_space<vmem>>, vector<1x512xf32>
    %3 = arith.truncf %0 : vector<2x32xf32> to vector<2x32xbf16>
    %cst = arith.constant dense<0.000000e+00> : vector<2x512xf32>
    %4 = tpu.matmul %3, %1, %cst {dimension_numbers = #tpu.dot_dimension_numbers<[1], [0], [0], [1], [0, 0, 1, 1], [], []>} : vector<2x32xbf16>, vector<32x512xbf16>, vector<2x512xf32> -> vector<2x512xf32>
    %5 = vector.broadcast %2 : vector<1x512xf32> to vector<2x512xf32>
    %6 = arith.addf %4, %5 : vector<2x512xf32>
    %7 = vector.extract_strided_slice %6 {offsets = [0, 0], sizes = [2, 256], strides = [1, 1]} : vector<2x512xf32> to vector<2x256xf32>
    %cst_5 = arith.constant 0.000000e+00 : f32
    %8 = vector.broadcast %cst_5 : f32 to vector<2x256xf32>
    %9 = arith.maximumf %7, %8 : vector<2x256xf32>
    %10 = vector.extract_strided_slice %6 {offsets = [0, 256], sizes = [2, 256], strides = [1, 1]} : vector<2x512xf32> to vector<2x256xf32>
    %c32 = arith.constant 32 : index
    %c0_6 = arith.constant 0 : index
    %11 = vector.load %arg2[%c32, %c0_6] : memref<672x512xbf16, #tpu.memory_space<vmem>>, vector<256x256xbf16>
    %c1 = arith.constant 1 : index
    %c0_7 = arith.constant 0 : index
    %12 = vector.load %arg3[%c1, %c0_7] : memref<8x512xf32, #tpu.memory_space<vmem>>, vector<1x256xf32>
    %13 = arith.truncf %9 : vector<2x256xf32> to vector<2x256xbf16>
    %cst_8 = arith.constant dense<0.000000e+00> : vector<2x256xf32>
    %14 = tpu.matmul %13, %11, %cst_8 {dimension_numbers = #tpu.dot_dimension_numbers<[1], [0], [0], [1], [0, 0, 1, 1], [], []>} : vector<2x256xbf16>, vector<256x256xbf16>, vector<2x256xf32> -> vector<2x256xf32>
    %15 = vector.broadcast %12 : vector<1x256xf32> to vector<2x256xf32>
    %16 = arith.addf %14, %15 : vector<2x256xf32>
    %cst_9 = arith.constant 0.000000e+00 : f32
    %17 = vector.broadcast %cst_9 : f32 to vector<2x256xf32>
    %18 = arith.maximumf %16, %17 : vector<2x256xf32>
    %19 = arith.addf %18, %10 : vector<2x256xf32>
    %cst_10 = arith.constant 0.000000e+00 : f32
    %20 = vector.broadcast %cst_10 : f32 to vector<2x256xf32>
    %21 = arith.maximumf %19, %20 : vector<2x256xf32>
    %c288 = arith.constant 288 : index
    %c0_11 = arith.constant 0 : index
    %22 = vector.load %arg2[%c288, %c0_11] : memref<672x512xbf16, #tpu.memory_space<vmem>>, vector<256x256xbf16>
    %c2 = arith.constant 2 : index
    %c0_12 = arith.constant 0 : index
    %23 = vector.load %arg3[%c2, %c0_12] : memref<8x512xf32, #tpu.memory_space<vmem>>, vector<1x256xf32>
    %24 = arith.truncf %21 : vector<2x256xf32> to vector<2x256xbf16>
    %cst_13 = arith.constant dense<0.000000e+00> : vector<2x256xf32>
    %25 = tpu.matmul %24, %22, %cst_13 {dimension_numbers = #tpu.dot_dimension_numbers<[1], [0], [0], [1], [0, 0, 1, 1], [], []>} : vector<2x256xbf16>, vector<256x256xbf16>, vector<2x256xf32> -> vector<2x256xf32>
    %26 = vector.broadcast %23 : vector<1x256xf32> to vector<2x256xf32>
    %27 = arith.addf %25, %26 : vector<2x256xf32>
    %28 = vector.extract_strided_slice %27 {offsets = [0, 0], sizes = [2, 128], strides = [1, 1]} : vector<2x256xf32> to vector<2x128xf32>
    %cst_14 = arith.constant 0.000000e+00 : f32
    %29 = vector.broadcast %cst_14 : f32 to vector<2x128xf32>
    %30 = arith.maximumf %28, %29 : vector<2x128xf32>
    %31 = vector.extract_strided_slice %27 {offsets = [0, 128], sizes = [2, 128], strides = [1, 1]} : vector<2x256xf32> to vector<2x128xf32>
    %c544 = arith.constant 544 : index
    %c0_15 = arith.constant 0 : index
    %32 = vector.load %arg2[%c544, %c0_15] : memref<672x512xbf16, #tpu.memory_space<vmem>>, vector<128x128xbf16>
    %c3 = arith.constant 3 : index
    %c0_16 = arith.constant 0 : index
    %33 = vector.load %arg3[%c3, %c0_16] : memref<8x512xf32, #tpu.memory_space<vmem>>, vector<1x128xf32>
    %34 = arith.truncf %30 : vector<2x128xf32> to vector<2x128xbf16>
    %cst_17 = arith.constant dense<0.000000e+00> : vector<2x128xf32>
    %35 = tpu.matmul %34, %32, %cst_17 {dimension_numbers = #tpu.dot_dimension_numbers<[1], [0], [0], [1], [0, 0, 1, 1], [], []>} : vector<2x128xbf16>, vector<128x128xbf16>, vector<2x128xf32> -> vector<2x128xf32>
    %36 = vector.broadcast %33 : vector<1x128xf32> to vector<2x128xf32>
    %37 = arith.addf %35, %36 : vector<2x128xf32>
    %cst_18 = arith.constant 0.000000e+00 : f32
    %38 = vector.broadcast %cst_18 : f32 to vector<2x128xf32>
    %39 = arith.maximumf %37, %38 : vector<2x128xf32>
    %40 = arith.addf %39, %31 : vector<2x128xf32>
    %cst_19 = arith.constant 0.000000e+00 : f32
    %41 = vector.broadcast %cst_19 : f32 to vector<2x128xf32>
    %42 = arith.maximumf %40, %41 : vector<2x128xf32>
    %c0_20 = arith.constant 0 : index
    %c0_21 = arith.constant 0 : index
    %43 = vector.load %arg4[%c0_20, %c0_21] : memref<2x128xf32, #tpu.memory_space<vmem>>, vector<2x128xf32>
    tpu.vector_store %arg4[%c0_20, %c0_21], %42 {strides = array<i32>} : memref<2x128xf32, #tpu.memory_space<vmem>>, vector<2x128xf32>,
    return
  }
  func.func @transform_0(%arg0: i32) -> (i32, i32) {
    %c0_i32 = arith.constant 0 : i32
    %c0_i32_0 = arith.constant 0 : i32
    return %arg0, %c0_i32 : i32, i32
  }
  func.func @transform_1(%arg0: i32) -> (i32, i32) {
    %c0_i32 = arith.constant 0 : i32
    %c0_i32_0 = arith.constant 0 : i32
    %c0_i32_1 = arith.constant 0 : i32
    return %c0_i32, %c0_i32_0 : i32, i32
  }
  func.func @transform_2(%arg0: i32) -> (i32, i32) {
    %c0_i32 = arith.constant 0 : i32
    %c0_i32_0 = arith.constant 0 : i32
    %c0_i32_1 = arith.constant 0 : i32
    return %c0_i32, %c0_i32_0 : i32, i32
  }
  func.func @transform_3(%arg0: i32) -> (i32, i32) {
    %c0_i32 = arith.constant 0 : i32
    %c0_i32_0 = arith.constant 0 : i32
    return %arg0, %c0_i32 : i32, i32
  }
}

</mosaic_0001>

<llo_original>
// kernel: tpu_custom_call.1
$region0: #{tpu_custom_call.1}
  #allocation0 [shape = 'u32[]', space=smem, size = 0x4, offset = 0x4, fixed_abs, tag = 'smem constant byte address 0x4 - core index']
  #allocation1 [shape = 'u32[144,128]{1,0:T(1,128)}', space=vmem, size = 0x12000, scoped, tag = 'internal scratch']
  %s0 = inlined_call_operand.hbm [shape: f32[2,32], index: 0, kind: input, shape index: {}]
  %s1 = inlined_call_operand.hbm [shape: bf16[672,512], index: 1, kind: input, shape index: {}]
  %s2 = inlined_call_operand.hbm [shape: f32[8,512], index: 2, kind: input, shape index: {}]
  %s3 = inlined_call_operand.hbm [shape: f32[2,128], index: 3, kind: output, shape index: {}]
  %s4 = sld [smem:[#allocation0]]
  $region34: #{tpu_custom_call.1} parent=0
    _
  %s6 = ssub.s32 1, %s4
  %s7 = scalar_select 0, %s6, %s4
  $region1: #{tpu_custom_call.1} parent=0
    #allocation2 [shape = 'u8[1024]{0}', space=vmem, size = 0x400, scoped, tag = 'input window, operand 0, single buffered']
    #allocation3 [shape = 's32[1]{0}', space=sflag, size = 0x4, scoped, tag = 'scoped memory for tpu_custom_call.1']
    #allocation4 [shape = 's32[1]{0}', space=sflag, size = 0x4, scoped, tag = 'scoped memory for tpu_custom_call.1']
    #allocation5 [shape = 'u8[688128]{0}', space=vmem, size = 0xa8000, scoped, tag = 'input window, operand 1, single buffered']
    #allocation6 [shape = 's32[1]{0}', space=sflag, size = 0x4, scoped, tag = 'scoped memory for tpu_custom_call.1']
    #allocation7 [shape = 'u8[16384]{0}', space=vmem, size = 0x4000, scoped, tag = 'input window, operand 2, single buffered']
    #allocation8 [shape = 'u8[1024]{0}', space=vmem, size = 0x400, scoped, tag = 'output window, operand 0, single buffered']
    %8 = vsyncpa [#allocation3], 0
    %9 = vsyncpa [#allocation6], 0
    %10 = vsyncpa [#allocation4], 0
    // Predicated region
    $region2: #{tpu_custom_call.1} parent=1 // pred_check
      _
    $region3: #{tpu_custom_call.1} parent=1 // pred_check_branch
      %12 = sbr.rel (0) target = $region5
    $region4: #{tpu_custom_call.1} parent=1 // pred_region
      %s14 = ssub.s32 32, 32
      %15 = vsyncadd [#allocation3], %s14
      %s17 = sshll.u32 [#allocation2], 4
      %s18 = int_to_ptr.vmem [resolvable:$true] %s17
      %20 = dma.hbm_to_vmem [thread:$0]  %s0, 32, %s18, [#allocation3]
    $region5: #{tpu_custom_call.1} parent=1 // pred_fallthru
      _
    // Predicated region
    $region6: #{tpu_custom_call.1} parent=1 // pred_check
      _
    $region7: #{tpu_custom_call.1} parent=1 // pred_check_branch
      %22 = sbr.rel (0) target = $region9
    $region8: #{tpu_custom_call.1} parent=1 // pred_region
      %s24 = ssub.s32 21504, 21504
      %25 = vsyncadd [#allocation6], %s24
      %s26 = sshll.u32 [#allocation5], 4
      %s27 = int_to_ptr.vmem [resolvable:$true] %s26
      %32 = dma.hbm_to_vmem [thread:$0]  %s1, 21504, %s27, [#allocation6], 256, 256, 16
    $region9: #{tpu_custom_call.1} parent=1 // pred_fallthru
      _
    // Predicated region
    $region10: #{tpu_custom_call.1} parent=1 // pred_check
      _
    $region11: #{tpu_custom_call.1} parent=1 // pred_check_branch
      %34 = sbr.rel (0) target = $region13
    $region12: #{tpu_custom_call.1} parent=1 // pred_region
      %s36 = ssub.s32 512, 512
      %37 = vsyncadd [#allocation6], %s36
      %s39 = sshll.u32 [#allocation7], 4
      %s40 = int_to_ptr.vmem [resolvable:$true] %s39
      %42 = dma.hbm_to_vmem [thread:$0]  %s2, 512, %s40, [#allocation6]
    $region13: #{tpu_custom_call.1} parent=1 // pred_fallthru
      _
    // Predicated region
    $region14: #{tpu_custom_call.1} parent=1 // pred_check
      _
    $region15: #{tpu_custom_call.1} parent=1 // pred_check_branch
      %44 = sbr.rel (0) target = $region17
    $region16: #{tpu_custom_call.1} parent=1 // pred_region
      %45 = dma.done [#allocation3], 32
    $region17: #{tpu_custom_call.1} parent=1 // pred_fallthru
      _
    // Predicated region
    $region18: #{tpu_custom_call.1} parent=1 // pred_check
      _
    $region19: #{tpu_custom_call.1} parent=1 // pred_check_branch
      %47 = sbr.rel (0) target = $region21
    $region20: #{tpu_custom_call.1} parent=1 // pred_region
      %48 = dma.done [#allocation6], 21504
    $region21: #{tpu_custom_call.1} parent=1 // pred_fallthru
      _
    // Predicated region
    $region22: #{tpu_custom_call.1} parent=1 // pred_check
      _
    $region23: #{tpu_custom_call.1} parent=1 // pred_check_branch
      %50 = sbr.rel (0) target = $region25
    $region24: #{tpu_custom_call.1} parent=1 // pred_region
      %51 = dma.done [#allocation6], 512
    $region25: #{tpu_custom_call.1} parent=1 // pred_fallthru
      _
    %v53 = vld [vmem:[#allocation2] sm:$0x3]
    %v54 = vld [vmem:[#allocation5] sm:$0xff]
    %v55 = vld [vmem:[#allocation5 + $0x8] sm:$0xff]
    %v56 = vld [vmem:[#allocation5 + $0x10] sm:$0xff]
    %v57 = vld [vmem:[#allocation5 + $0x18] sm:$0xff]
    %v58 = vld [vmem:[#allocation5 + $0x20] sm:$0xff]
    %v59 = vld [vmem:[#allocation5 + $0x28] sm:$0xff]
    %v60 = vld [vmem:[#allocation5 + $0x30] sm:$0xff]
    %v61 = vld [vmem:[#allocation5 + $0x38] sm:$0xff]
    %v62 = vld [vmem:[#allocation7] ss:$8 sm:$0xf]
    %v63 = vpack.c.bf16 %v53, %v53
    %v65 = vlaneseq
    %v66 = vshrl.u32 %v65, 7
    %v67 = vsub.s32 0, %v66
    %v68 = vrot.slane %v62, %v67
    %v69 = vlaneseq
    %v70 = vshrl.u32 %v69, 7
    %v71 = vsub.s32 1, %v70
    %v72 = vrot.slane %v62, %v71
    %v73 = vlaneseq
    %v74 = vshrl.u32 %v73, 7
    %v75 = vsub.s32 2, %v74
    %v76 = vrot.slane %v62, %v75
    %v77 = vlaneseq
    %v78 = vshrl.u32 %v77, 7
    %v79 = vsub.s32 3, %v78
    %v80 = vrot.slane %v62, %v79
    %v93 = vunpack.c.l.b16 %v54
    %v94 = vunpack.c.h.b16 %v54
    %v95 = vunpack.c.l.b16 %v55
    %v96 = vunpack.c.h.b16 %v55
    %v97 = vunpack.c.l.b16 %v56
    %v98 = vunpack.c.h.b16 %v56
    %v99 = vunpack.c.l.b16 %v57
    %v100 = vunpack.c.h.b16 %v57
    %v101 = vunpack.c.l.b16 %v58
    %v102 = vunpack.c.h.b16 %v58
    %v103 = vunpack.c.l.b16 %v59
    %v104 = vunpack.c.h.b16 %v59
    %v105 = vunpack.c.l.b16 %v60
    %v106 = vunpack.c.h.b16 %v60
    %v107 = vunpack.c.l.b16 %v61
    %v108 = vunpack.c.h.b16 %v61
    %v109 = vpack.c.b16 %v97, %v93
    %v110 = vpack.c.b16 %v98, %v94
    %v111 = vpack.c.b16 %v99, %v95
    %v112 = vpack.c.b16 %v100, %v96
    %v113 = vpack.c.b16 %v105, %v101
    %v114 = vpack.c.b16 %v106, %v102
    %v115 = vpack.c.b16 %v107, %v103
    %v116 = vpack.c.b16 %v108, %v104
    %vm125 = vcmask 261120
    %v127 = vsel %vm125, %v63, 0
    %129 = vmatprep.subr.bf16.mxu0 %v110
    %130 = vmatpush1.bf16.msra.mxu0 %v109
    %131 = vmatprep.subr.bf16.mxu0 %v114
    %132 = vmatpush1.bf16.msra.mxu0 %v113
    %133 = vmatprep.subr.bf16.mxu0 0
    %134 = vmatpush1.bf16.msra.mxu0 0
    %135 = vmatprep.subr.bf16.mxu0 0
    %136 = vmatpush1.bf16.msra.mxu0 0
    %137 = vmatprep.subr.bf16.mxu0 0
    %138 = vmatpush1.bf16.msra.mxu0 0
    %139 = vmatprep.subr.bf16.mxu0 0
    %140 = vmatpush1.bf16.msra.mxu0 0
    %141 = vmatprep.subr.bf16.mxu0 0
    %142 = vmatpush1.bf16.msra.mxu0 0
    %143 = vmatprep.subr.bf16.mxu0 0
    %144 = vmatpush1.bf16.msra.mxu0 0
    %145 = vmatprep.subr.bf16.mxu0 0
    %146 = vmatpush1.bf16.msra.mxu0 0
    %147 = vmatprep.subr.bf16.mxu0 0
    %148 = vmatpush1.bf16.msra.mxu0 0
    %149 = vmatprep.subr.bf16.mxu0 0
    %150 = vmatpush1.bf16.msra.mxu0 0
    %151 = vmatprep.subr.bf16.mxu0 0
    %152 = vmatpush1.bf16.msra.mxu0 0
    %153 = vmatprep.subr.bf16.mxu0 0
    %154 = vmatpush1.bf16.msra.mxu0 0
    %155 = vmatprep.subr.bf16.mxu0 0
    %156 = vmatpush1.bf16.msra.mxu0 0
    %157 = vmatprep.subr.bf16.mxu0 0
    %158 = vmatpush1.bf16.msra.mxu0 0
    %159 = vmatprep.subr.bf16.mxu0 0
    %160 = vmatpush1.bf16.msra.mxu0 0
    %161 = vmatprep.mubr.bf16.mxu0 0
    %162 = vmatmul.mubr.bf16.gmra.mrb[0].mxu0 %v127
    %v163 = vpop.f32.mrb[0].mxu0
    %v164 = vadd.f32 %v68, %v163
    %v165 = vpop.f32.mrb[0].mxu0
    %v166 = vadd.f32 %v72, %v165
    %v167 = vpop.f32.mrb[0].mxu0
    %v168 = vpop.f32.mrb[0].mxu0
    %169 = vdwg.mxu0
    %170 = vmatprep.subr.bf16.mxu0 %v112
    %171 = vmatpush1.bf16.msra.mxu0 %v111
    %172 = vmatprep.subr.bf16.mxu0 %v116
    %173 = vmatpush1.bf16.msra.mxu0 %v115
    %174 = vmatprep.subr.bf16.mxu0 0
    %175 = vmatpush1.bf16.msra.mxu0 0
    %176 = vmatprep.subr.bf16.mxu0 0
    %177 = vmatpush1.bf16.msra.mxu0 0
    %178 = vmatprep.subr.bf16.mxu0 0
    %179 = vmatpush1.bf16.msra.mxu0 0
    %180 = vmatprep.subr.bf16.mxu0 0
    %181 = vmatpush1.bf16.msra.mxu0 0
    %182 = vmatprep.subr.bf16.mxu0 0
    %183 = vmatpush1.bf16.msra.mxu0 0
    %184 = vmatprep.subr.bf16.mxu0 0
    %185 = vmatpush1.bf16.msra.mxu0 0
    %186 = vmatprep.subr.bf16.mxu0 0
    %187 = vmatpush1.bf16.msra.mxu0 0
    %188 = vmatprep.subr.bf16.mxu0 0
    %189 = vmatpush1.bf16.msra.mxu0 0
    %190 = vmatprep.subr.bf16.mxu0 0
    %191 = vmatpush1.bf16.msra.mxu0 0
    %192 = vmatprep.subr.bf16.mxu0 0
    %193 = vmatpush1.bf16.msra.mxu0 0
    %194 = vmatprep.subr.bf16.mxu0 0
    %195 = vmatpush1.bf16.msra.mxu0 0
    %196 = vmatprep.subr.bf16.mxu0 0
    %197 = vmatpush1.bf16.msra.mxu0 0
    %198 = vmatprep.subr.bf16.mxu0 0
    %199 = vmatpush1.bf16.msra.mxu0 0
    %200 = vmatprep.subr.bf16.mxu0 0
    %201 = vmatpush1.bf16.msra.mxu0 0
    %202 = vmatprep.mubr.bf16.mxu0 0
    %203 = vmatmul.mubr.bf16.gmra.mrb[0].mxu0 %v127
    %v204 = vpop.f32.mrb[0].mxu0
    %v205 = vadd.f32 %v76, %v204
    %v206 = vpop.f32.mrb[0].mxu0
    %v207 = vadd.f32 %v80, %v206
    %v208 = vpop.f32.mrb[0].mxu0
    %v209 = vpop.f32.mrb[0].mxu0
    %210 = vdwg.mxu0
    %v211 = vmax.f32 %v164, 0.0
    %v212 = vmax.f32 %v166, 0.0
    %v213 = vld [vmem:[#allocation5 + $0x40] sm:$0xff]
    %v214 = vld [vmem:[#allocation5 + $0x50] sm:$0xff]
    %v215 = vld [vmem:[#allocation5 + $0x60] sm:$0xff]
    %v216 = vld [vmem:[#allocation5 + $0x70] sm:$0xff]
    %v217 = vld [vmem:[#allocation5 + $0x80] sm:$0xff]
    %v218 = vld [vmem:[#allocation5 + $0x90] sm:$0xff]
    %v219 = vld [vmem:[#allocation5 + $0xa0] sm:$0xff]
    %v220 = vld [vmem:[#allocation5 + $0xb0] sm:$0xff]
    %v221 = vld [vmem:[#allocation5 + $0xc0] sm:$0xff]
    %v222 = vld [vmem:[#allocation5 + $0xd0] sm:$0xff]
    %v223 = vld [vmem:[#allocation5 + $0xe0] sm:$0xff]
    %v224 = vld [vmem:[#allocation5 + $0xf0] sm:$0xff]
    %v225 = vld [vmem:[#allocation5 + $0x100] sm:$0xff]
    %v226 = vld [vmem:[#allocation5 + $0x110] sm:$0xff]
    %v227 = vld [vmem:[#allocation5 + $0x120] sm:$0xff]
    %v228 = vld [vmem:[#allocation5 + $0x130] sm:$0xff]
    %v229 = vld [vmem:[#allocation5 + $0x140] sm:$0xff]
    %v230 = vld [vmem:[#allocation5 + $0x150] sm:$0xff]
    %v231 = vld [vmem:[#allocation5 + $0x160] sm:$0xff]
    %v232 = vld [vmem:[#allocation5 + $0x170] sm:$0xff]
    %v233 = vld [vmem:[#allocation5 + $0x180] sm:$0xff]
    %v234 = vld [vmem:[#allocation5 + $0x190] sm:$0xff]
    %v235 = vld [vmem:[#allocation5 + $0x1a0] sm:$0xff]
    %v236 = vld [vmem:[#allocation5 + $0x1b0] sm:$0xff]
    %v237 = vld [vmem:[#allocation5 + $0x1c0] sm:$0xff]
    %v238 = vld [vmem:[#allocation5 + $0x1d0] sm:$0xff]
    %v239 = vld [vmem:[#allocation5 + $0x1e0] sm:$0xff]
    %v240 = vld [vmem:[#allocation5 + $0x1f0] sm:$0xff]
    %v241 = vld [vmem:[#allocation5 + $0x200] sm:$0xff]
    %v242 = vld [vmem:[#allocation5 + $0x210] sm:$0xff]
    %v243 = vld [vmem:[#allocation5 + $0x220] sm:$0xff]
    %v244 = vld [vmem:[#allocation5 + $0x230] sm:$0xff]
    %s245 = scalar_lea.vmem [#allocation7], 1
    %v246 = vld [vmem:[%s245] ss:$8 sm:$0x3]
    %v247 = vpack.c.bf16 %v211, %v211
    %v248 = vpack.c.bf16 %v212, %v212
    %v250 = vlaneseq
    %v251 = vshrl.u32 %v250, 7
    %v252 = vsub.s32 0, %v251
    %v253 = vrot.slane %v246, %v252
    %v254 = vlaneseq
    %v255 = vshrl.u32 %v254, 7
    %v256 = vsub.s32 1, %v255
    %v257 = vrot.slane %v246, %v256
    %v292 = vunpack.c.l.b16 %v213
    %v293 = vunpack.c.h.b16 %v213
    %v294 = vunpack.c.l.b16 %v214
    %v295 = vunpack.c.h.b16 %v214
    %v296 = vunpack.c.l.b16 %v215
    %v297 = vunpack.c.h.b16 %v215
    %v298 = vunpack.c.l.b16 %v216
    %v299 = vunpack.c.h.b16 %v216
    %v300 = vunpack.c.l.b16 %v217
    %v301 = vunpack.c.h.b16 %v217
    %v302 = vunpack.c.l.b16 %v218
    %v303 = vunpack.c.h.b16 %v218
    %v304 = vunpack.c.l.b16 %v219
    %v305 = vunpack.c.h.b16 %v219
    %v306 = vunpack.c.l.b16 %v220
    %v307 = vunpack.c.h.b16 %v220
    %v308 = vunpack.c.l.b16 %v221
    %v309 = vunpack.c.h.b16 %v221
    %v310 = vunpack.c.l.b16 %v222
    %v311 = vunpack.c.h.b16 %v222
    %v312 = vunpack.c.l.b16 %v223
    %v313 = vunpack.c.h.b16 %v223
    %v314 = vunpack.c.l.b16 %v224
    %v315 = vunpack.c.h.b16 %v224
    %v316 = vunpack.c.l.b16 %v225
    %v317 = vunpack.c.h.b16 %v225
    %v318 = vunpack.c.l.b16 %v226
    %v319 = vunpack.c.h.b16 %v226
    %v320 = vunpack.c.l.b16 %v227
    %v321 = vunpack.c.h.b16 %v227
    %v322 = vunpack.c.l.b16 %v228
    %v323 = vunpack.c.h.b16 %v228
    %v324 = vunpack.c.l.b16 %v229
    %v325 = vunpack.c.h.b16 %v229
    %v326 = vunpack.c.l.b16 %v230
    %v327 = vunpack.c.h.b16 %v230
    %v328 = vunpack.c.l.b16 %v231
    %v329 = vunpack.c.h.b16 %v231
    %v330 = vunpack.c.l.b16 %v232
    %v331 = vunpack.c.h.b16 %v232
    %v332 = vunpack.c.l.b16 %v233
    %v333 = vunpack.c.h.b16 %v233
    %v334 = vunpack.c.l.b16 %v234
    %v335 = vunpack.c.h.b16 %v234
    %v336 = vunpack.c.l.b16 %v235
    %v337 = vunpack.c.h.b16 %v235
    %v338 = vunpack.c.l.b16 %v236
    %v339 = vunpack.c.h.b16 %v236
    %v340 = vunpack.c.l.b16 %v237
    %v341 = vunpack.c.h.b16 %v237
    %v342 = vunpack.c.l.b16 %v238
    %v343 = vunpack.c.h.b16 %v238
    %v344 = vunpack.c.l.b16 %v239
    %v345 = vunpack.c.h.b16 %v239
    %v346 = vunpack.c.l.b16 %v240
    %v347 = vunpack.c.h.b16 %v240
    %v348 = vunpack.c.l.b16 %v241
    %v349 = vunpack.c.h.b16 %v241
    %v350 = vunpack.c.l.b16 %v242
    %v351 = vunpack.c.h.b16 %v242
    %v352 = vunpack.c.l.b16 %v243
    %v353 = vunpack.c.h.b16 %v243
    %v354 = vunpack.c.l.b16 %v244
    %v355 = vunpack.c.h.b16 %v244
    %v356 = vpack.c.b16 %v294, %v292
    %v357 = vpack.c.b16 %v295, %v293
    %v358 = vpack.c.b16 %v298, %v296
    %v359 = vpack.c.b16 %v299, %v297
    %v360 = vpack.c.b16 %v302, %v300
    %v361 = vpack.c.b16 %v303, %v301
    %v362 = vpack.c.b16 %v306, %v304
    %v363 = vpack.c.b16 %v307, %v305
    %v364 = vpack.c.b16 %v310, %v308
    %v365 = vpack.c.b16 %v311, %v309
    %v366 = vpack.c.b16 %v314, %v312
    %v367 = vpack.c.b16 %v315, %v313
    %v368 = vpack.c.b16 %v318, %v316
    %v369 = vpack.c.b16 %v319, %v317
    %v370 = vpack.c.b16 %v322, %v320
    %v371 = vpack.c.b16 %v323, %v321
    %v372 = vpack.c.b16 %v326, %v324
    %v373 = vpack.c.b16 %v327, %v325
    %v374 = vpack.c.b16 %v330, %v328
    %v375 = vpack.c.b16 %v331, %v329
    %v376 = vpack.c.b16 %v334, %v332
    %v377 = vpack.c.b16 %v335, %v333
    %v378 = vpack.c.b16 %v338, %v336
    %v379 = vpack.c.b16 %v339, %v337
    %v380 = vpack.c.b16 %v342, %v340
    %v381 = vpack.c.b16 %v343, %v341
    %v382 = vpack.c.b16 %v346, %v344
    %v383 = vpack.c.b16 %v347, %v345
    %v384 = vpack.c.b16 %v350, %v348
    %v385 = vpack.c.b16 %v351, %v349
    %v386 = vpack.c.b16 %v354, %v352
    %v387 = vpack.c.b16 %v355, %v353
    %420 = vmatprep.subr.bf16.mxu0 %v357
    %421 = vmatpush1.bf16.msra.mxu0 %v356
    %422 = vmatprep.subr.bf16.mxu0 %v359
    %423 = vmatpush1.bf16.msra.mxu0 %v358
    %424 = vmatprep.subr.bf16.mxu0 %v361
    %425 = vmatpush1.bf16.msra.mxu0 %v360
    %426 = vmatprep.subr.bf16.mxu0 %v363
    %427 = vmatpush1.bf16.msra.mxu0 %v362
    %428 = vmatprep.subr.bf16.mxu0 %v365
    %429 = vmatpush1.bf16.msra.mxu0 %v364
    %430 = vmatprep.subr.bf16.mxu0 %v367
    %431 = vmatpush1.bf16.msra.mxu0 %v366
    %432 = vmatprep.subr.bf16.mxu0 %v369
    %433 = vmatpush1.bf16.msra.mxu0 %v368
    %434 = vmatprep.subr.bf16.mxu0 %v371
    %435 = vmatpush1.bf16.msra.mxu0 %v370
    %436 = vmatprep.subr.bf16.mxu0 %v373
    %437 = vmatpush1.bf16.msra.mxu0 %v372
    %438 = vmatprep.subr.bf16.mxu0 %v375
    %439 = vmatpush1.bf16.msra.mxu0 %v374
    %440 = vmatprep.subr.bf16.mxu0 %v377
    %441 = vmatpush1.bf16.msra.mxu0 %v376
    %442 = vmatprep.subr.bf16.mxu0 %v379
    %443 = vmatpush1.bf16.msra.mxu0 %v378
    %444 = vmatprep.subr.bf16.mxu0 %v381
    %445 = vmatpush1.bf16.msra.mxu0 %v380
    %446 = vmatprep.subr.bf16.mxu0 %v383
    %447 = vmatpush1.bf16.msra.mxu0 %v382
    %448 = vmatprep.subr.bf16.mxu0 %v385
    %449 = vmatpush1.bf16.msra.mxu0 %v384
    %450 = vmatprep.subr.bf16.mxu0 %v387
    %451 = vmatpush1.bf16.msra.mxu0 %v386
    %452 = vmatprep.mubr.bf16.mxu0 %v248
    %453 = vmatmul.mubr.bf16.gmra.mrb[0].mxu0 %v247
    %v454 = vpop.f32.mrb[0].mxu0
    %v455 = vadd.f32 %v253, %v454
    %v456 = vpop.f32.mrb[0].mxu0
    %v457 = vadd.f32 %v257, %v456
    %v458 = vpop.f32.mrb[0].mxu0
    %v459 = vpop.f32.mrb[0].mxu0
    %460 = vdwg.mxu0
    %v461 = vmax.f32 %v455, 0.0
    %v462 = vmax.f32 %v457, 0.0
    %v463 = vadd.f32 %v461, %v205
    %v464 = vadd.f32 %v462, %v207
    %v465 = vmax.f32 %v463, 0.0
    %v466 = vmax.f32 %v464, 0.0
    %v467 = vld [vmem:[#allocation5 + $0x240] sm:$0xff]
    %v468 = vld [vmem:[#allocation5 + $0x250] sm:$0xff]
    %v469 = vld [vmem:[#allocation5 + $0x260] sm:$0xff]
    %v470 = vld [vmem:[#allocation5 + $0x270] sm:$0xff]
    %v471 = vld [vmem:[#allocation5 + $0x280] sm:$0xff]
    %v472 = vld [vmem:[#allocation5 + $0x290] sm:$0xff]
    %v473 = vld [vmem:[#allocation5 + $0x2a0] sm:$0xff]
    %v474 = vld [vmem:[#allocation5 + $0x2b0] sm:$0xff]
    %v475 = vld [vmem:[#allocation5 + $0x2c0] sm:$0xff]
    %v476 = vld [vmem:[#allocation5 + $0x2d0] sm:$0xff]
    %v477 = vld [vmem:[#allocation5 + $0x2e0] sm:$0xff]
    %v478 = vld [vmem:[#allocation5 + $0x2f0] sm:$0xff]
    %v479 = vld [vmem:[#allocation5 + $0x300] sm:$0xff]
    %v480 = vld [vmem:[#allocation5 + $0x310] sm:$0xff]
    %v481 = vld [vmem:[#allocation5 + $0x320] sm:$0xff]
    %v482 = vld [vmem:[#allocation5 + $0x330] sm:$0xff]
    %v483 = vld [vmem:[#allocation5 + $0x340] sm:$0xff]
    %v484 = vld [vmem:[#allocation5 + $0x350] sm:$0xff]
    %v485 = vld [vmem:[#allocation5 + $0x360] sm:$0xff]
    %v486 = vld [vmem:[#allocation5 + $0x370] sm:$0xff]
    %v487 = vld [vmem:[#allocation5 + $0x380] sm:$0xff]
    %v488 = vld [vmem:[#allocation5 + $0x390] sm:$0xff]
    %v489 = vld [vmem:[#allocation5 + $0x3a0] sm:$0xff]
    %v490 = vld [vmem:[#allocation5 + $0x3b0] sm:$0xff]
    %v491 = vld [vmem:[#allocation5 + $0x3c0] sm:$0xff]
    %v492 = vld [vmem:[#allocation5 + $0x3d0] sm:$0xff]
    %v493 = vld [vmem:[#allocation5 + $0x3e0] sm:$0xff]
    %v494 = vld [vmem:[#allocation5 + $0x3f0] sm:$0xff]
    %v495 = vld [vmem:[#allocation5 + $0x400] sm:$0xff]
    %v496 = vld [vmem:[#allocation5 + $0x410] sm:$0xff]
    %v497 = vld [vmem:[#allocation5 + $0x420] sm:$0xff]
    %v498 = vld [vmem:[#allocation5 + $0x430] sm:$0xff]
    %s499 = scalar_lea.vmem [#allocation7], 2
    %v500 = vld [vmem:[%s499] ss:$8 sm:$0x3]
    %v501 = vpack.c.bf16 %v465, %v465
    %v502 = vpack.c.bf16 %v466, %v466
    %v504 = vlaneseq
    %v505 = vshrl.u32 %v504, 7
    %v506 = vsub.s32 0, %v505
    %v507 = vrot.slane %v500, %v506
    %v508 = vlaneseq
    %v509 = vshrl.u32 %v508, 7
    %v510 = vsub.s32 1, %v509
    %v511 = vrot.slane %v500, %v510
    %v546 = vunpack.c.l.b16 %v467
    %v547 = vunpack.c.h.b16 %v467
    %v548 = vunpack.c.l.b16 %v468
    %v549 = vunpack.c.h.b16 %v468
    %v550 = vunpack.c.l.b16 %v469
    %v551 = vunpack.c.h.b16 %v469
    %v552 = vunpack.c.l.b16 %v470
    %v553 = vunpack.c.h.b16 %v470
    %v554 = vunpack.c.l.b16 %v471
    %v555 = vunpack.c.h.b16 %v471
    %v556 = vunpack.c.l.b16 %v472
    %v557 = vunpack.c.h.b16 %v472
    %v558 = vunpack.c.l.b16 %v473
    %v559 = vunpack.c.h.b16 %v473
    %v560 = vunpack.c.l.b16 %v474
    %v561 = vunpack.c.h.b16 %v474
    %v562 = vunpack.c.l.b16 %v475
    %v563 = vunpack.c.h.b16 %v475
    %v564 = vunpack.c.l.b16 %v476
    %v565 = vunpack.c.h.b16 %v476
    %v566 = vunpack.c.l.b16 %v477
    %v567 = vunpack.c.h.b16 %v477
    %v568 = vunpack.c.l.b16 %v478
    %v569 = vunpack.c.h.b16 %v478
    %v570 = vunpack.c.l.b16 %v479
    %v571 = vunpack.c.h.b16 %v479
    %v572 = vunpack.c.l.b16 %v480
    %v573 = vunpack.c.h.b16 %v480
    %v574 = vunpack.c.l.b16 %v481
    %v575 = vunpack.c.h.b16 %v481
    %v576 = vunpack.c.l.b16 %v482
    %v577 = vunpack.c.h.b16 %v482
    %v578 = vunpack.c.l.b16 %v483
    %v579 = vunpack.c.h.b16 %v483
    %v580 = vunpack.c.l.b16 %v484
    %v581 = vunpack.c.h.b16 %v484
    %v582 = vunpack.c.l.b16 %v485
    %v583 = vunpack.c.h.b16 %v485
    %v584 = vunpack.c.l.b16 %v486
    %v585 = vunpack.c.h.b16 %v486
    %v586 = vunpack.c.l.b16 %v487
    %v587 = vunpack.c.h.b16 %v487
    %v588 = vunpack.c.l.b16 %v488
    %v589 = vunpack.c.h.b16 %v488
    %v590 = vunpack.c.l.b16 %v489
    %v591 = vunpack.c.h.b16 %v489
    %v592 = vunpack.c.l.b16 %v490
    %v593 = vunpack.c.h.b16 %v490
    %v594 = vunpack.c.l.b16 %v491
    %v595 = vunpack.c.h.b16 %v491
    %v596 = vunpack.c.l.b16 %v492
    %v597 = vunpack.c.h.b16 %v492
    %v598 = vunpack.c.l.b16 %v493
    %v599 = vunpack.c.h.b16 %v493
    %v600 = vunpack.c.l.b16 %v494
    %v601 = vunpack.c.h.b16 %v494
    %v602 = vunpack.c.l.b16 %v495
    %v603 = vunpack.c.h.b16 %v495
    %v604 = vunpack.c.l.b16 %v496
    %v605 = vunpack.c.h.b16 %v496
    %v606 = vunpack.c.l.b16 %v497
    %v607 = vunpack.c.h.b16 %v497
    %v608 = vunpack.c.l.b16 %v498
    %v609 = vunpack.c.h.b16 %v498
    %v610 = vpack.c.b16 %v548, %v546
    %v611 = vpack.c.b16 %v549, %v547
    %v612 = vpack.c.b16 %v552, %v550
    %v613 = vpack.c.b16 %v553, %v551
    %v614 = vpack.c.b16 %v556, %v554
    %v615 = vpack.c.b16 %v557, %v555
    %v616 = vpack.c.b16 %v560, %v558
    %v617 = vpack.c.b16 %v561, %v559
    %v618 = vpack.c.b16 %v564, %v562
    %v619 = vpack.c.b16 %v565, %v563
    %v620 = vpack.c.b16 %v568, %v566
    %v621 = vpack.c.b16 %v569, %v567
    %v622 = vpack.c.b16 %v572, %v570
    %v623 = vpack.c.b16 %v573, %v571
    %v624 = vpack.c.b16 %v576, %v574
    %v625 = vpack.c.b16 %v577, %v575
    %v626 = vpack.c.b16 %v580, %v578
    %v627 = vpack.c.b16 %v581, %v579
    %v628 = vpack.c.b16 %v584, %v582
    %v629 = vpack.c.b16 %v585, %v583
    %v630 = vpack.c.b16 %v588, %v586
    %v631 = vpack.c.b16 %v589, %v587
    %v632 = vpack.c.b16 %v592, %v590
    %v633 = vpack.c.b16 %v593, %v591
    %v634 = vpack.c.b16 %v596, %v594
    %v635 = vpack.c.b16 %v597, %v595
    %v636 = vpack.c.b16 %v600, %v598
    %v637 = vpack.c.b16 %v601, %v599
    %v638 = vpack.c.b16 %v604, %v602
    %v639 = vpack.c.b16 %v605, %v603
    %v640 = vpack.c.b16 %v608, %v606
    %v641 = vpack.c.b16 %v609, %v607
    %674 = vmatprep.subr.bf16.mxu0 %v611
    %675 = vmatpush1.bf16.msra.mxu0 %v610
    %676 = vmatprep.subr.bf16.mxu0 %v613
    %677 = vmatpush1.bf16.msra.mxu0 %v612
    %678 = vmatprep.subr.bf16.mxu0 %v615
    %679 = vmatpush1.bf16.msra.mxu0 %v614
    %680 = vmatprep.subr.bf16.mxu0 %v617
    %681 = vmatpush1.bf16.msra.mxu0 %v616
    %682 = vmatprep.subr.bf16.mxu0 %v619
    %683 = vmatpush1.bf16.msra.mxu0 %v618
    %684 = vmatprep.subr.bf16.mxu0 %v621
    %685 = vmatpush1.bf16.msra.mxu0 %v620
    %686 = vmatprep.subr.bf16.mxu0 %v623
    %687 = vmatpush1.bf16.msra.mxu0 %v622
    %688 = vmatprep.subr.bf16.mxu0 %v625
    %689 = vmatpush1.bf16.msra.mxu0 %v624
    %690 = vmatprep.subr.bf16.mxu0 %v627
    %691 = vmatpush1.bf16.msra.mxu0 %v626
    %692 = vmatprep.subr.bf16.mxu0 %v629
    %693 = vmatpush1.bf16.msra.mxu0 %v628
    %694 = vmatprep.subr.bf16.mxu0 %v631
    %695 = vmatpush1.bf16.msra.mxu0 %v630
    %696 = vmatprep.subr.bf16.mxu0 %v633
    %697 = vmatpush1.bf16.msra.mxu0 %v632
    %698 = vmatprep.subr.bf16.mxu0 %v635
    %699 = vmatpush1.bf16.msra.mxu0 %v634
    %700 = vmatprep.subr.bf16.mxu0 %v637
    %701 = vmatpush1.bf16.msra.mxu0 %v636
    %702 = vmatprep.subr.bf16.mxu0 %v639
    %703 = vmatpush1.bf16.msra.mxu0 %v638
    %704 = vmatprep.subr.bf16.mxu0 %v641
    %705 = vmatpush1.bf16.msra.mxu0 %v640
    %706 = vmatprep.mubr.bf16.mxu0 %v502
    %707 = vmatmul.mubr.bf16.gmra.mrb[0].mxu0 %v501
    %v708 = vpop.f32.mrb[0].mxu0
    %v709 = vadd.f32 %v507, %v708
    %v710 = vpop.f32.mrb[0].mxu0
    %v711 = vadd.f32 %v511, %v710
    %v712 = vpop.f32.mrb[0].mxu0
    %v713 = vpop.f32.mrb[0].mxu0
    %714 = vdwg.mxu0
    %v715 = vmax.f32 %v709, 0.0
    %v716 = vld [vmem:[#allocation5 + $0x440] sm:$0xf]
    %v717 = vld [vmem:[#allocation5 + $0x450] sm:$0xf]
    %v718 = vld [vmem:[#allocation5 + $0x460] sm:$0xf]
    %v719 = vld [vmem:[#allocation5 + $0x470] sm:$0xf]
    %v720 = vld [vmem:[#allocation5 + $0x480] sm:$0xf]
    %v721 = vld [vmem:[#allocation5 + $0x490] sm:$0xf]
    %v722 = vld [vmem:[#allocation5 + $0x4a0] sm:$0xf]
    %v723 = vld [vmem:[#allocation5 + $0x4b0] sm:$0xf]
    %v724 = vld [vmem:[#allocation5 + $0x4c0] sm:$0xf]
    %v725 = vld [vmem:[#allocation5 + $0x4d0] sm:$0xf]
    %v726 = vld [vmem:[#allocation5 + $0x4e0] sm:$0xf]
    %v727 = vld [vmem:[#allocation5 + $0x4f0] sm:$0xf]
    %v728 = vld [vmem:[#allocation5 + $0x500] sm:$0xf]
    %v729 = vld [vmem:[#allocation5 + $0x510] sm:$0xf]
    %v730 = vld [vmem:[#allocation5 + $0x520] sm:$0xf]
    %v731 = vld [vmem:[#allocation5 + $0x530] sm:$0xf]
    %v732 = vld [vmem:[#allocation7 + $0x3] ss:$0 sm:$0xff]
    %v733 = vpack.c.bf16 %v715, %v715
    %v750 = vunpack.c.l.b16 %v716
    %v751 = vunpack.c.l.b16 %v717
    %v752 = vunpack.c.l.b16 %v718
    %v753 = vunpack.c.l.b16 %v719
    %v754 = vunpack.c.l.b16 %v720
    %v755 = vunpack.c.l.b16 %v721
    %v756 = vunpack.c.l.b16 %v722
    %v757 = vunpack.c.l.b16 %v723
    %v758 = vunpack.c.l.b16 %v724
    %v759 = vunpack.c.l.b16 %v725
    %v760 = vunpack.c.l.b16 %v726
    %v761 = vunpack.c.l.b16 %v727
    %v762 = vunpack.c.l.b16 %v728
    %v763 = vunpack.c.l.b16 %v729
    %v764 = vunpack.c.l.b16 %v730
    %v765 = vunpack.c.l.b16 %v731
    %v766 = vpack.c.b16 %v751, %v750
    %v767 = vpack.c.b16 %v753, %v752
    %v768 = vpack.c.b16 %v755, %v754
    %v769 = vpack.c.b16 %v757, %v756
    %v770 = vpack.c.b16 %v759, %v758
    %v771 = vpack.c.b16 %v761, %v760
    %v772 = vpack.c.b16 %v763, %v762
    %v773 = vpack.c.b16 %v765, %v764
    %782 = vmatprep.subr.bf16.mxu0 0
    %783 = vmatpush1.bf16.msra.mxu0 %v766
    %784 = vmatprep.subr.bf16.mxu0 0
    %785 = vmatpush1.bf16.msra.mxu0 %v767
    %786 = vmatprep.subr.bf16.mxu0 0
    %787 = vmatpush1.bf16.msra.mxu0 %v768
    %788 = vmatprep.subr.bf16.mxu0 0
    %789 = vmatpush1.bf16.msra.mxu0 %v769
    %790 = vmatprep.subr.bf16.mxu0 0
    %791 = vmatpush1.bf16.msra.mxu0 %v770
    %792 = vmatprep.subr.bf16.mxu0 0
    %793 = vmatpush1.bf16.msra.mxu0 %v771
    %794 = vmatprep.subr.bf16.mxu0 0
    %795 = vmatpush1.bf16.msra.mxu0 %v772
    %796 = vmatprep.subr.bf16.mxu0 0
    %797 = vmatpush1.bf16.msra.mxu0 %v773
    %798 = vmatprep.subr.bf16.mxu0 0
    %799 = vmatpush1.bf16.msra.mxu0 0
    %800 = vmatprep.subr.bf16.mxu0 0
    %801 = vmatpush1.bf16.msra.mxu0 0
    %802 = vmatprep.subr.bf16.mxu0 0
    %803 = vmatpush1.bf16.msra.mxu0 0
    %804 = vmatprep.subr.bf16.mxu0 0
    %805 = vmatpush1.bf16.msra.mxu0 0
    %806 = vmatprep.subr.bf16.mxu0 0
    %807 = vmatpush1.bf16.msra.mxu0 0
    %808 = vmatprep.subr.bf16.mxu0 0
    %809 = vmatpush1.bf16.msra.mxu0 0
    %810 = vmatprep.subr.bf16.mxu0 0
    %811 = vmatpush1.bf16.msra.mxu0 0
    %812 = vmatprep.subr.bf16.mxu0 0
    %813 = vmatpush1.bf16.msra.mxu0 0
    %814 = vmatprep.mubr.bf16.mxu0 0
    %815 = vmatmul.mubr.bf16.gmra.mrb[0].mxu0 %v733
    %v816 = vpop.f32.mrb[0].mxu0
    %v817 = vadd.f32 %v732, %v816
    %v818 = vpop.f32.mrb[0].mxu0
    %v819 = vpop.f32.mrb[0].mxu0
    %v820 = vpop.f32.mrb[0].mxu0
    %821 = vdwg.mxu0
    %v822 = vmax.f32 %v817, 0.0
    %v823 = vadd.f32 %v822, %v711
    %v824 = vmax.f32 %v823, 0.0
    %825 = vst [vmem:[#allocation8] sm:$0x3] %v824
    // Predicated region
    $region26: #{tpu_custom_call.1} parent=1 // pred_check
      _
    $region27: #{tpu_custom_call.1} parent=1 // pred_check_branch
      %827 = sbr.rel (0) target = $region29
    $region28: #{tpu_custom_call.1} parent=1 // pred_region
      %s829 = ssub.s32 32, 32
      %830 = vsyncadd [#allocation4], %s829
      %s832 = sshll.u32 [#allocation8], 4
      %s833 = int_to_ptr.vmem [resolvable:$true] %s832
      %835 = dma.vmem_to_hbm [thread:$0]  %s833, 32, %s3, [#allocation4]
    $region29: #{tpu_custom_call.1} parent=1 // pred_fallthru
      _
    // Predicated region
    $region30: #{tpu_custom_call.1} parent=1 // pred_check
      _
    $region31: #{tpu_custom_call.1} parent=1 // pred_check_branch
      %837 = sbr.rel (0) target = $region33
    $region32: #{tpu_custom_call.1} parent=1 // pred_region
      %838 = dma.done [#allocation4], 32
    $region33: #{tpu_custom_call.1} parent=1 // pred_fallthru
      _
    %839 = vsyncpa [#allocation3], 1
    %840 = vsyncpa [#allocation6], 1
    %841 = vsyncpa [#allocation4], 1

</llo_original>
